<compile_context>
chip_gen: v5e
topology: v5e:2x2
jax: 0.10.0
libtpu: 0.0.40
codegen_flags: <defaults>
</compile_context>

<pallas_src>
import jax
import jax.numpy as jnp
from jax.experimental import pallas as pl
from jax.experimental.pallas import tpu as pltpu


def _round_up(n: int, m: int) -> int:
    return ((n + m - 1) // m) * m


_FULL_UNROLL_T = 128        # fully unroll the recurrence up to this many steps
_HOIST_VREG_BUDGET = 32     # hold hoisted per-step inputs in vregs up to this


def _make_kernel(mxu_dtype, unroll_time: bool, hoist_inputs: bool):
    def kernel(iv_ref, x_ref,
               w_init_ref, b_init_ref,
               w_ih_ref, b_ih_ref,
               w_hh_ref, b_hh_ref,
               w_fc_ref, b_fc_ref,
               out_ref):
        T = x_ref.shape[1]

        # Weights arrive pre-cast to mxu_dtype from the wrapper; biases are f32.
        w_hh = w_hh_ref[...]                        # (H_p, H_p), resident
        w_ih = w_ih_ref[...]                        # (1, H_p) f32 (input_size==1)
        b_sum = b_ih_ref[...] + b_hh_ref[...]       # (1, H_p) f32

        # h0 = initial_values_to_hidden(initial_values); f32 accumulate.
        h = (jnp.dot(iv_ref[...].astype(mxu_dtype), w_init_ref[...],
                     preferred_element_type=jnp.float32) + b_init_ref[...])

        def step_math(inp, h):
            # MXU dot in mxu_dtype (f32 accumulate); add + tanh stay f32.
            return jnp.tanh(inp + jnp.dot(h.astype(mxu_dtype), w_hh,
                                          preferred_element_type=jnp.float32))

        if unroll_time:
            x = x_ref[...]                          # (B_TILE, T), lane-dense
            if hoist_inputs:
                # Few vregs total: keep every per-step input term in registers
                # so the unrolled serial chain is only dot + add + tanh.
                inps = [x[:, t:t + 1] * w_ih + b_sum for t in range(T)]
                for t in range(T):
                    h = step_math(inps[t], h)
            else:
                # Larger tiles: compute the input term inline each step; the
                # VPU mul/add co-issues under MXU latency (no scratch traffic).
                for t in range(T):
                    h = step_math(x[:, t:t + 1] * w_ih + b_sum, h)
        else:
            # Long sequences: bounded program size / live ranges.
            def body(t, h):
                x_t = x_ref[:, pl.ds(t, 1)]         # (B_TILE, 1)
                return step_math(x_t * w_ih + b_sum, h)
            h = jax.lax.fori_loop(0, T, body, h, unroll=8)

        # fc(out[:, -1, :]) — lane-dense (padded-O) store.
        out_ref[...] = (jnp.dot(h.astype(mxu_dtype), w_fc_ref[...],
                                preferred_element_type=jnp.float32)
                        + b_fc_ref[...])

    return kernel


def _vmem_block_bytes(shape, dtype) -> int:
    """(sublane,lane)-tiled VMEM footprint of one pipeline buffer."""
    itemsize = jnp.dtype(dtype).itemsize
    sub = 8 * (4 // itemsize)                       # 8 rows f32, 16 rows bf16
    lead = 1
    for d in shape[:-2]:
        lead *= d
    r = shape[-2] if len(shape) >= 2 else 1
    c = shape[-1]
    return lead * _round_up(max(r, 1), sub) * _round_up(max(c, 1), 128) * itemsize


def _is_v7x() -> bool:
    try:
        kind = jax.devices()[0].device_kind.lower()
    except Exception:
        return False
    return ("v7" in kind) or ("tpu7" in kind)


def namrnn_forward(initial_values, prev_time_steps, params, *,
                   b_tile: int = 128, mxu_dtype=jnp.bfloat16):
    # Mirror the module: a 2-D prev_time_steps means input_size == 1.
    if prev_time_steps.ndim == 3:
        assert prev_time_steps.shape[-1] == 1
        prev_time_steps = prev_time_steps[..., 0]
    assert initial_values.shape[0] == prev_time_steps.shape[0]
    assert initial_values.shape[1] == params["w_init"].shape[0]

    f32 = jnp.float32
    B, IV = initial_values.shape
    T = prev_time_steps.shape[1]
    H = params["w_hh"].shape[0]
    O = params["w_fc"].shape[1]

    # Pad everything to native-tile-aligned shapes; zeros keep the math exact.
    IV_p = _round_up(IV, 128)
    H_p = _round_up(H, 128)
    O_p = _round_up(O, 128)
    B_TILE = b_tile if B > b_tile else _round_up(B, 8)
    B_p = _round_up(B, B_TILE)
    n_tiles = B_p // B_TILE

    def pad2(a, r, c, dtype=f32):
        a = jnp.asarray(a, f32)
        a = jnp.pad(a, ((0, r - a.shape[0]), (0, c - a.shape[1])))
        return a.astype(dtype)

    iv_p = pad2(initial_values, B_p, IV_p)                    # (B_p, IV_p) f32
    x_p = pad2(prev_time_steps, B_p, T)                       # (B_p, T) lane-dense
    w_init = pad2(params["w_init"], IV_p, H_p, mxu_dtype)
    b_init = pad2(params["b_init"], 1, H_p)
    w_ih = pad2(params["w_ih"], 1, H_p)
    b_ih = pad2(params["b_ih"], 1, H_p)
    w_hh = pad2(params["w_hh"], H_p, H_p, mxu_dtype)          # zero rows+cols
    b_hh = pad2(params["b_hh"], 1, H_p)
    w_fc = pad2(params["w_fc"], H_p, O_p, mxu_dtype)          # zero rows
    b_fc = pad2(params["b_fc"], 1, O_p)

    unroll_time = T <= _FULL_UNROLL_T
    hoist_inputs = unroll_time and (
        T * (B_TILE // 8) * (H_p // 128) <= _HOIST_VREG_BUDGET)

    const2 = lambda i: (0, 0)
    batched = lambda i: (i, 0)
    in_specs = [
        pl.BlockSpec((B_TILE, IV_p), batched),     # initial_values
        pl.BlockSpec((B_TILE, T), batched),        # prev_time_steps
        pl.BlockSpec((IV_p, H_p), const2),         # resident weights/biases
        pl.BlockSpec((1, H_p), const2),
        pl.BlockSpec((1, H_p), const2),
        pl.BlockSpec((1, H_p), const2),
        pl.BlockSpec((H_p, H_p), const2),
        pl.BlockSpec((1, H_p), const2),
        pl.BlockSpec((H_p, O_p), const2),
        pl.BlockSpec((1, O_p), const2),
    ]
    out_specs = pl.BlockSpec((B_TILE, O_p), batched)

    # Explicit VMEM budget: 2x-double-buffered blocks + headroom, capped at
    # v7x's 64 MiB physical VMEM so oversize tiles fail loudly at compile.
    block_bytes = (
        _vmem_block_bytes((B_TILE, IV_p), f32)
        + _vmem_block_bytes((B_TILE, T), f32)
        + _vmem_block_bytes((IV_p, H_p), mxu_dtype)
        + _vmem_block_bytes((H_p, H_p), mxu_dtype)
        + _vmem_block_bytes((H_p, O_p), mxu_dtype)
        + 4 * _vmem_block_bytes((1, H_p), f32)
        + _vmem_block_bytes((1, O_p), f32)
        + _vmem_block_bytes((B_TILE, O_p), f32))
    vmem_limit = int(min(64 << 20, max(8 << 20, 4 * block_bytes)))

    flops = 2 * B_p * (IV_p * H_p + T * H_p * H_p + H_p * O_p)
    bytes_accessed = int(sum(int(a.size) * a.dtype.itemsize for a in
                             (iv_p, x_p, w_init, b_init, w_ih, b_ih,
                              w_hh, b_hh, w_fc, b_fc)) + B_p * O_p * 4)
    cost = pl.CostEstimate(flops=int(flops),
                           transcendentals=int(B_p * T * H_p),
                           bytes_accessed=bytes_accessed)

    if n_tiles > 1 and _is_v7x():
        dim_sem = (pltpu.CORE_PARALLEL,)   # shard batch tiles across both TCs
    else:
        dim_sem = (pltpu.PARALLEL,)

    kernel = _make_kernel(mxu_dtype, unroll_time, hoist_inputs)
    out_p = pl.pallas_call(
        kernel,
        out_shape=jax.ShapeDtypeStruct((B_p, O_p), f32),
        grid_spec=pltpu.PrefetchScalarGridSpec(
            num_scalar_prefetch=0,
            grid=(n_tiles,),
            in_specs=in_specs,
            out_specs=out_specs,
        ),
        compiler_params=pltpu.CompilerParams(
            dimension_semantics=dim_sem,
            vmem_limit_bytes=vmem_limit),
        cost_estimate=cost,
    )(iv_p, x_p, w_init, b_init, w_ih, b_ih, w_hh, b_hh, w_fc, b_fc)

    return out_p[:B, :O]


def namrnn_ref(initial_values, prev_time_steps, params):
    """Pure-JAX reference (same math as the PyTorch module)."""
    if prev_time_steps.ndim == 3:
        prev_time_steps = prev_time_steps[..., 0]
    h = initial_values @ params["w_init"] + params["b_init"]
    for t in range(prev_time_steps.shape[1]):
        pre = (prev_time_steps[:, t:t + 1] * params["w_ih"]
               + params["b_ih"] + params["b_hh"] + h @ params["w_hh"])
        h = jnp.tanh(pre)
    return h @ params["w_fc"] + params["b_fc"]


def init_params(key, iv_size=5, hidden=32, input_size=1, output_size=1):
    ks = jax.random.split(key, 8)

    def unif(k, shape, fan):
        bound = 1.0 / float(fan) ** 0.5
        return jax.random.uniform(k, shape, jnp.float32, -bound, bound)

    return {
        "w_init": unif(ks[0], (iv_size, hidden), iv_size),     # Linear(IV, H)
        "b_init": unif(ks[1], (1, hidden), iv_size),
        "w_ih":   unif(ks[2], (input_size, hidden), hidden),   # RNN input weights
        "b_ih":   unif(ks[3], (1, hidden), hidden),
        "w_hh":   unif(ks[4], (hidden, hidden), hidden),       # RNN hidden weights
        "b_hh":   unif(ks[5], (1, hidden), hidden),
        "w_fc":   unif(ks[6], (hidden, output_size), hidden),  # Linear(H, O)
        "b_fc":   unif(ks[7], (1, output_size), hidden),
    }


if __name__ == "__main__":
    B, IV, H, T = 2, 5, 32, 8

    key = jax.random.PRNGKey(0)
    k_iv, k_x, k_p = jax.random.split(key, 3)

    initial_values = jax.random.normal(k_iv, (B, IV), jnp.float32)
    prev_time_steps = jax.random.normal(k_x, (B, T), jnp.float32)
    params = init_params(k_p, iv_size=IV, hidden=H, input_size=1, output_size=1)

    ref = namrnn_ref(initial_values, prev_time_steps, params)

    # Bit-exactness check: f32 MXU path must match the reference tightly.
    out_f32 = jax.block_until_ready(
        namrnn_forward(initial_values, prev_time_steps, params,
                       mxu_dtype=jnp.float32))
    assert out_f32.shape == (B, 1)
    assert jnp.allclose(out_f32, ref, atol=1e-5, rtol=1e-5)

    # Default fast path: bf16 MXU operands (f32 accumulate / VPU / EUP).
    # Rounding compounds through the T-step recurrence, so the tolerance is
    # loosened; the f32 run above is the exactness check.
    out = jax.block_until_ready(
        namrnn_forward(initial_values, prev_time_steps, params))
    assert out.shape == (B, 1)
    assert jnp.allclose(out, ref, atol=5e-2, rtol=5e-2)

    print("KERNEL_OK")
</pallas_src>

<mosaic_0001>
module attributes {stable_mosaic.version = 11 : i64} {
  func.func @kernel(%arg0: i32, %arg1: memref<8x128xf32, #tpu.memory_space<vmem>>, %arg2: memref<8x8xf32, #tpu.memory_space<vmem>>, %arg3: memref<128x128xf32, #tpu.memory_space<vmem>>, %arg4: memref<1x128xf32, #tpu.memory_space<vmem>>, %arg5: memref<1x128xf32, #tpu.memory_space<vmem>>, %arg6: memref<1x128xf32, #tpu.memory_space<vmem>>, %arg7: memref<128x128xf32, #tpu.memory_space<vmem>>, %arg8: memref<1x128xf32, #tpu.memory_space<vmem>>, %arg9: memref<128x128xf32, #tpu.memory_space<vmem>>, %arg10: memref<1x128xf32, #tpu.memory_space<vmem>>, %arg11: memref<8x128xf32, #tpu.memory_space<vmem>>) attributes {dimension_semantics = [#tpu.dimension_semantics<parallel>], iteration_bounds = array<i64: 1>, scalar_prefetch = 0 : i64, scratch_operands = 0 : i64, tpu.core_type = #tpu.core_type<tc>, window_params = [{transform_indices = @transform_0, window_bounds = array<i64: 8, 128>}, {transform_indices = @transform_1, window_bounds = array<i64: 8, 8>}, {pipeline_mode = #tpu.pipeline_mode<synchronous>, transform_indices = @transform_2, window_bounds = array<i64: 128, 128>}, {pipeline_mode = #tpu.pipeline_mode<synchronous>, transform_indices = @transform_3, window_bounds = array<i64: 1, 128>}, {pipeline_mode = #tpu.pipeline_mode<synchronous>, transform_indices = @transform_4, window_bounds = array<i64: 1, 128>}, {pipeline_mode = #tpu.pipeline_mode<synchronous>, transform_indices = @transform_5, window_bounds = array<i64: 1, 128>}, {pipeline_mode = #tpu.pipeline_mode<synchronous>, transform_indices = @transform_6, window_bounds = array<i64: 128, 128>}, {pipeline_mode = #tpu.pipeline_mode<synchronous>, transform_indices = @transform_7, window_bounds = array<i64: 1, 128>}, {pipeline_mode = #tpu.pipeline_mode<synchronous>, transform_indices = @transform_8, window_bounds = array<i64: 128, 128>}, {pipeline_mode = #tpu.pipeline_mode<synchronous>, transform_indices = @transform_9, window_bounds = array<i64: 1, 128>}, {transform_indices = @transform_10, window_bounds = array<i64: 8, 128>}]} {
    %c0 = arith.constant 0 : index
    %c0_0 = arith.constant 0 : index
    %0 = vector.load %arg7[%c0, %c0_0] : memref<128x128xf32, #tpu.memory_space<vmem>>, vector<128x128xf32>
    %c0_1 = arith.constant 0 : index
    %c0_2 = arith.constant 0 : index
    %1 = vector.load %arg5[%c0_1, %c0_2] : memref<1x128xf32, #tpu.memory_space<vmem>>, vector<1x128xf32>
    %c0_3 = arith.constant 0 : index
    %c0_4 = arith.constant 0 : index
    %2 = vector.load %arg6[%c0_3, %c0_4] : memref<1x128xf32, #tpu.memory_space<vmem>>, vector<1x128xf32>
    %c0_5 = arith.constant 0 : index
    %c0_6 = arith.constant 0 : index
    %3 = vector.load %arg8[%c0_5, %c0_6] : memref<1x128xf32, #tpu.memory_space<vmem>>, vector<1x128xf32>
    %4 = arith.addf %2, %3 : vector<1x128xf32>
    %c0_7 = arith.constant 0 : index
    %c0_8 = arith.constant 0 : index
    %5 = vector.load %arg1[%c0_7, %c0_8] : memref<8x128xf32, #tpu.memory_space<vmem>>, vector<8x128xf32>
    %c0_9 = arith.constant 0 : index
    %c0_10 = arith.constant 0 : index
    %6 = vector.load %arg3[%c0_9, %c0_10] : memref<128x128xf32, #tpu.memory_space<vmem>>, vector<128x128xf32>
    %cst = arith.constant dense<0.000000e+00> : vector<8x128xf32>
    %7 = tpu.matmul %5, %6, %cst {dimension_numbers = #tpu.dot_dimension_numbers<[1], [0], [0], [1], [0, 0, 1, 1], [], []>} : vector<8x128xf32>, vector<128x128xf32>, vector<8x128xf32> -> vector<8x128xf32>
    %c0_11 = arith.constant 0 : index
    %c0_12 = arith.constant 0 : index
    %8 = vector.load %arg4[%c0_11, %c0_12] : memref<1x128xf32, #tpu.memory_space<vmem>>, vector<1x128xf32>
    %9 = vector.broadcast %8 : vector<1x128xf32> to vector<8x128xf32>
    %10 = arith.addf %7, %9 : vector<8x128xf32>
    %c0_13 = arith.constant 0 : index
    %c0_14 = arith.constant 0 : index
    %11 = vector.load %arg2[%c0_13, %c0_14] : memref<8x8xf32, #tpu.memory_space<vmem>>, vector<8x8xf32>
    %12 = vector.extract_strided_slice %11 {offsets = [0, 0], sizes = [8, 1], strides = [1, 1]} : vector<8x8xf32> to vector<8x1xf32>
    %13 = vector.broadcast %12 : vector<8x1xf32> to vector<8x128xf32>
    %14 = vector.broadcast %1 : vector<1x128xf32> to vector<8x128xf32>
    %15 = arith.mulf %13, %14 : vector<8x128xf32>
    %16 = vector.broadcast %4 : vector<1x128xf32> to vector<8x128xf32>
    %17 = arith.addf %15, %16 : vector<8x128xf32>
    %18 = vector.extract_strided_slice %11 {offsets = [0, 1], sizes = [8, 1], strides = [1, 1]} : vector<8x8xf32> to vector<8x1xf32>
    %19 = vector.broadcast %18 : vector<8x1xf32> to vector<8x128xf32>
    %20 = vector.broadcast %1 : vector<1x128xf32> to vector<8x128xf32>
    %21 = arith.mulf %19, %20 : vector<8x128xf32>
    %22 = vector.broadcast %4 : vector<1x128xf32> to vector<8x128xf32>
    %23 = arith.addf %21, %22 : vector<8x128xf32>
    %24 = vector.extract_strided_slice %11 {offsets = [0, 2], sizes = [8, 1], strides = [1, 1]} : vector<8x8xf32> to vector<8x1xf32>
    %25 = vector.broadcast %24 : vector<8x1xf32> to vector<8x128xf32>
    %26 = vector.broadcast %1 : vector<1x128xf32> to vector<8x128xf32>
    %27 = arith.mulf %25, %26 : vector<8x128xf32>
    %28 = vector.broadcast %4 : vector<1x128xf32> to vector<8x128xf32>
    %29 = arith.addf %27, %28 : vector<8x128xf32>
    %30 = vector.extract_strided_slice %11 {offsets = [0, 3], sizes = [8, 1], strides = [1, 1]} : vector<8x8xf32> to vector<8x1xf32>
    %31 = vector.broadcast %30 : vector<8x1xf32> to vector<8x128xf32>
    %32 = vector.broadcast %1 : vector<1x128xf32> to vector<8x128xf32>
    %33 = arith.mulf %31, %32 : vector<8x128xf32>
    %34 = vector.broadcast %4 : vector<1x128xf32> to vector<8x128xf32>
    %35 = arith.addf %33, %34 : vector<8x128xf32>
    %36 = vector.extract_strided_slice %11 {offsets = [0, 4], sizes = [8, 1], strides = [1, 1]} : vector<8x8xf32> to vector<8x1xf32>
    %37 = vector.broadcast %36 : vector<8x1xf32> to vector<8x128xf32>
    %38 = vector.broadcast %1 : vector<1x128xf32> to vector<8x128xf32>
    %39 = arith.mulf %37, %38 : vector<8x128xf32>
    %40 = vector.broadcast %4 : vector<1x128xf32> to vector<8x128xf32>
    %41 = arith.addf %39, %40 : vector<8x128xf32>
    %42 = vector.extract_strided_slice %11 {offsets = [0, 5], sizes = [8, 1], strides = [1, 1]} : vector<8x8xf32> to vector<8x1xf32>
    %43 = vector.broadcast %42 : vector<8x1xf32> to vector<8x128xf32>
    %44 = vector.broadcast %1 : vector<1x128xf32> to vector<8x128xf32>
    %45 = arith.mulf %43, %44 : vector<8x128xf32>
    %46 = vector.broadcast %4 : vector<1x128xf32> to vector<8x128xf32>
    %47 = arith.addf %45, %46 : vector<8x128xf32>
    %48 = vector.extract_strided_slice %11 {offsets = [0, 6], sizes = [8, 1], strides = [1, 1]} : vector<8x8xf32> to vector<8x1xf32>
    %49 = vector.broadcast %48 : vector<8x1xf32> to vector<8x128xf32>
    %50 = vector.broadcast %1 : vector<1x128xf32> to vector<8x128xf32>
    %51 = arith.mulf %49, %50 : vector<8x128xf32>
    %52 = vector.broadcast %4 : vector<1x128xf32> to vector<8x128xf32>
    %53 = arith.addf %51, %52 : vector<8x128xf32>
    %54 = vector.extract_strided_slice %11 {offsets = [0, 7], sizes = [8, 1], strides = [1, 1]} : vector<8x8xf32> to vector<8x1xf32>
    %55 = vector.broadcast %54 : vector<8x1xf32> to vector<8x128xf32>
    %56 = vector.broadcast %1 : vector<1x128xf32> to vector<8x128xf32>
    %57 = arith.mulf %55, %56 : vector<8x128xf32>
    %58 = vector.broadcast %4 : vector<1x128xf32> to vector<8x128xf32>
    %59 = arith.addf %57, %58 : vector<8x128xf32>
    %cst_15 = arith.constant dense<0.000000e+00> : vector<8x128xf32>
    %60 = tpu.matmul %10, %0, %cst_15 {dimension_numbers = #tpu.dot_dimension_numbers<[1], [0], [0], [1], [0, 0, 1, 1], [], []>} : vector<8x128xf32>, vector<128x128xf32>, vector<8x128xf32> -> vector<8x128xf32>
    %61 = arith.addf %17, %60 : vector<8x128xf32>
    %62 = math.tanh %61 : vector<8x128xf32>
    %cst_16 = arith.constant dense<0.000000e+00> : vector<8x128xf32>
    %63 = tpu.matmul %62, %0, %cst_16 {dimension_numbers = #tpu.dot_dimension_numbers<[1], [0], [0], [1], [0, 0, 1, 1], [], []>} : vector<8x128xf32>, vector<128x128xf32>, vector<8x128xf32> -> vector<8x128xf32>
    %64 = arith.addf %23, %63 : vector<8x128xf32>
    %65 = math.tanh %64 : vector<8x128xf32>
    %cst_17 = arith.constant dense<0.000000e+00> : vector<8x128xf32>
    %66 = tpu.matmul %65, %0, %cst_17 {dimension_numbers = #tpu.dot_dimension_numbers<[1], [0], [0], [1], [0, 0, 1, 1], [], []>} : vector<8x128xf32>, vector<128x128xf32>, vector<8x128xf32> -> vector<8x128xf32>
    %67 = arith.addf %29, %66 : vector<8x128xf32>
    %68 = math.tanh %67 : vector<8x128xf32>
    %cst_18 = arith.constant dense<0.000000e+00> : vector<8x128xf32>
    %69 = tpu.matmul %68, %0, %cst_18 {dimension_numbers = #tpu.dot_dimension_numbers<[1], [0], [0], [1], [0, 0, 1, 1], [], []>} : vector<8x128xf32>, vector<128x128xf32>, vector<8x128xf32> -> vector<8x128xf32>
    %70 = arith.addf %35, %69 : vector<8x128xf32>
    %71 = math.tanh %70 : vector<8x128xf32>
    %cst_19 = arith.constant dense<0.000000e+00> : vector<8x128xf32>
    %72 = tpu.matmul %71, %0, %cst_19 {dimension_numbers = #tpu.dot_dimension_numbers<[1], [0], [0], [1], [0, 0, 1, 1], [], []>} : vector<8x128xf32>, vector<128x128xf32>, vector<8x128xf32> -> vector<8x128xf32>
    %73 = arith.addf %41, %72 : vector<8x128xf32>
    %74 = math.tanh %73 : vector<8x128xf32>
    %cst_20 = arith.constant dense<0.000000e+00> : vector<8x128xf32>
    %75 = tpu.matmul %74, %0, %cst_20 {dimension_numbers = #tpu.dot_dimension_numbers<[1], [0], [0], [1], [0, 0, 1, 1], [], []>} : vector<8x128xf32>, vector<128x128xf32>, vector<8x128xf32> -> vector<8x128xf32>
    %76 = arith.addf %47, %75 : vector<8x128xf32>
    %77 = math.tanh %76 : vector<8x128xf32>
    %cst_21 = arith.constant dense<0.000000e+00> : vector<8x128xf32>
    %78 = tpu.matmul %77, %0, %cst_21 {dimension_numbers = #tpu.dot_dimension_numbers<[1], [0], [0], [1], [0, 0, 1, 1], [], []>} : vector<8x128xf32>, vector<128x128xf32>, vector<8x128xf32> -> vector<8x128xf32>
    %79 = arith.addf %53, %78 : vector<8x128xf32>
    %80 = math.tanh %79 : vector<8x128xf32>
    %cst_22 = arith.constant dense<0.000000e+00> : vector<8x128xf32>
    %81 = tpu.matmul %80, %0, %cst_22 {dimension_numbers = #tpu.dot_dimension_numbers<[1], [0], [0], [1], [0, 0, 1, 1], [], []>} : vector<8x128xf32>, vector<128x128xf32>, vector<8x128xf32> -> vector<8x128xf32>
    %82 = arith.addf %59, %81 : vector<8x128xf32>
    %83 = math.tanh %82 : vector<8x128xf32>
    %c0_23 = arith.constant 0 : index
    %c0_24 = arith.constant 0 : index
    %84 = vector.load %arg9[%c0_23, %c0_24] : memref<128x128xf32, #tpu.memory_space<vmem>>, vector<128x128xf32>
    %cst_25 = arith.constant dense<0.000000e+00> : vector<8x128xf32>
    %85 = tpu.matmul %83, %84, %cst_25 {dimension_numbers = #tpu.dot_dimension_numbers<[1], [0], [0], [1], [0, 0, 1, 1], [], []>} : vector<8x128xf32>, vector<128x128xf32>, vector<8x128xf32> -> vector<8x128xf32>
    %c0_26 = arith.constant 0 : index
    %c0_27 = arith.constant 0 : index
    %86 = vector.load %arg10[%c0_26, %c0_27] : memref<1x128xf32, #tpu.memory_space<vmem>>, vector<1x128xf32>
    %87 = vector.broadcast %86 : vector<1x128xf32> to vector<8x128xf32>
    %88 = arith.addf %85, %87 : vector<8x128xf32>
    %c0_28 = arith.constant 0 : index
    %c0_29 = arith.constant 0 : index
    %89 = vector.load %arg11[%c0_28, %c0_29] : memref<8x128xf32, #tpu.memory_space<vmem>>, vector<8x128xf32>
    tpu.vector_store %arg11[%c0_28, %c0_29], %88 {strides = array<i32>} : memref<8x128xf32, #tpu.memory_space<vmem>>, vector<8x128xf32>,
    return
  }
  func.func @transform_0(%arg0: i32) -> (i32, i32) {
    %c0_i32 = arith.constant 0 : i32
    %c0_i32_0 = arith.constant 0 : i32
    return %arg0, %c0_i32 : i32, i32
  }
  func.func @transform_1(%arg0: i32) -> (i32, i32) {
    %c0_i32 = arith.constant 0 : i32
    %c0_i32_0 = arith.constant 0 : i32
    return %arg0, %c0_i32 : i32, i32
  }
  func.func @transform_2(%arg0: i32) -> (i32, i32) {
    %c0_i32 = arith.constant 0 : i32
    %c0_i32_0 = arith.constant 0 : i32
    %c0_i32_1 = arith.constant 0 : i32
    return %c0_i32, %c0_i32_0 : i32, i32
  }
  func.func @transform_3(%arg0: i32) -> (i32, i32) {
    %c0_i32 = arith.constant 0 : i32
    %c0_i32_0 = arith.constant 0 : i32
    %c0_i32_1 = arith.constant 0 : i32
    return %c0_i32, %c0_i32_0 : i32, i32
  }
  func.func @transform_4(%arg0: i32) -> (i32, i32) {
    %c0_i32 = arith.constant 0 : i32
    %c0_i32_0 = arith.constant 0 : i32
    %c0_i32_1 = arith.constant 0 : i32
    return %c0_i32, %c0_i32_0 : i32, i32
  }
  func.func @transform_5(%arg0: i32) -> (i32, i32) {
    %c0_i32 = arith.constant 0 : i32
    %c0_i32_0 = arith.constant 0 : i32
    %c0_i32_1 = arith.constant 0 : i32
    return %c0_i32, %c0_i32_0 : i32, i32
  }
  func.func @transform_6(%arg0: i32) -> (i32, i32) {
    %c0_i32 = arith.constant 0 : i32
    %c0_i32_0 = arith.constant 0 : i32
    %c0_i32_1 = arith.constant 0 : i32
    return %c0_i32, %c0_i32_0 : i32, i32
  }
  func.func @transform_7(%arg0: i32) -> (i32, i32) {
    %c0_i32 = arith.constant 0 : i32
    %c0_i32_0 = arith.constant 0 : i32
    %c0_i32_1 = arith.constant 0 : i32
    return %c0_i32, %c0_i32_0 : i32, i32
  }
  func.func @transform_8(%arg0: i32) -> (i32, i32) {
    %c0_i32 = arith.constant 0 : i32
    %c0_i32_0 = arith.constant 0 : i32
    %c0_i32_1 = arith.constant 0 : i32
    return %c0_i32, %c0_i32_0 : i32, i32
  }
  func.func @transform_9(%arg0: i32) -> (i32, i32) {
    %c0_i32 = arith.constant 0 : i32
    %c0_i32_0 = arith.constant 0 : i32
    %c0_i32_1 = arith.constant 0 : i32
    return %c0_i32, %c0_i32_0 : i32, i32
  }
  func.func @transform_10(%arg0: i32) -> (i32, i32) {
    %c0_i32 = arith.constant 0 : i32
    %c0_i32_0 = arith.constant 0 : i32
    return %arg0, %c0_i32 : i32, i32
  }
}

</mosaic_0001>

<llo_original>
// kernel: tpu_custom_call.1
$region0: #{tpu_custom_call.1}
  #allocation0 [shape = 'u32[]', space=smem, size = 0x4, offset = 0x4, fixed_abs, tag = 'smem constant byte address 0x4 - core index']
  #allocation1 [shape = 'u32[72,128]{1,0:T(1,128)}', space=vmem, size = 0x9000, scoped, tag = 'internal scratch']
  %s0 = inlined_call_operand.hbm [shape: f32[8,128], index: 0, kind: input, shape index: {}]
  %s1 = inlined_call_operand.hbm [shape: f32[8,8], index: 1, kind: input, shape index: {}]
  %s2 = inlined_call_operand.hbm [shape: f32[128,128], index: 2, kind: input, shape index: {}]
  %s3 = inlined_call_operand.vmem [shape: f32[1,128], index: 3, kind: input, shape index: {}]
  %s4 = inlined_call_operand.vmem [shape: f32[1,128], index: 4, kind: input, shape index: {}]
  %s5 = inlined_call_operand.vmem [shape: f32[1,128], index: 5, kind: input, shape index: {}]
  %s6 = inlined_call_operand.hbm [shape: f32[128,128], index: 6, kind: input, shape index: {}]
  %s7 = inlined_call_operand.vmem [shape: f32[1,128], index: 7, kind: input, shape index: {}]
  %s8 = inlined_call_operand.hbm [shape: f32[128,128], index: 8, kind: input, shape index: {}]
  %s9 = inlined_call_operand.vmem [shape: f32[1,128], index: 9, kind: input, shape index: {}]
  %s10 = inlined_call_operand.hbm [shape: f32[8,128], index: 10, kind: output, shape index: {}]
  %s11 = sld [smem:[#allocation0]]
  $region70: #{tpu_custom_call.1} parent=0
    _
  %s13 = ssub.s32 1, %s11
  %s14 = scalar_select 0, %s13, %s11
  $region1: #{tpu_custom_call.1} parent=0
    #allocation2 [shape = 'u8[4096]{0}', space=vmem, size = 0x1000, scoped, tag = 'input window, operand 0, single buffered']
    #allocation3 [shape = 's32[1]{0}', space=sflag, size = 0x4, scoped, tag = 'scoped memory for tpu_custom_call.1']
    #allocation4 [shape = 's32[1]{0}', space=sflag, size = 0x4, scoped, tag = 'scoped memory for tpu_custom_call.1']
    #allocation5 [shape = 'u8[4096]{0}', space=vmem, size = 0x1000, scoped, tag = 'input window, operand 1, single buffered']
    #allocation6 [shape = 's32[1]{0}', space=sflag, size = 0x4, scoped, tag = 'scoped memory for tpu_custom_call.1']
    #allocation7 [shape = 'u8[65536]{0}', space=vmem, size = 0x10000, scoped, tag = 'input window, operand 2, single buffered']
    #allocation8 [shape = 'u8[65536]{0}', space=vmem, size = 0x10000, scoped, tag = 'input window, operand 6, single buffered']
    #allocation9 [shape = 's32[1]{0}', space=sflag, size = 0x4, scoped, tag = 'scoped memory for tpu_custom_call.1']
    #allocation10 [shape = 'u8[65536]{0}', space=vmem, size = 0x10000, scoped, tag = 'input window, operand 8, single buffered']
    #allocation11 [shape = 'u8[4096]{0}', space=vmem, size = 0x1000, scoped, tag = 'output window, operand 0, single buffered']
    %15 = vsyncpa [#allocation3], 0
    %16 = vsyncpa [#allocation6], 0
    %17 = vsyncpa [#allocation9], 0
    %18 = vsyncpa [#allocation4], 0
    // Predicated region
    $region2: #{tpu_custom_call.1} parent=1 // pred_check
      _
    $region3: #{tpu_custom_call.1} parent=1 // pred_check_branch
      %20 = sbr.rel (0) target = $region5
    $region4: #{tpu_custom_call.1} parent=1 // pred_region
      %22 = vsyncadd [#allocation3], 0
      %s24 = sshll.u32 %s0, 4
      %s25 = int_to_ptr.hbm [resolvable:$true] %s24
      %s26 = sshll.u32 [#allocation2], 4
      %s27 = int_to_ptr.vmem [resolvable:$true] %s26
      %29 = dma.hbm_to_vmem [thread:$0]  %s25, 128, %s27, [#allocation3]
    $region5: #{tpu_custom_call.1} parent=1 // pred_fallthru
      _
    // Predicated region
    $region6: #{tpu_custom_call.1} parent=1 // pred_check
      _
    $region7: #{tpu_custom_call.1} parent=1 // pred_check_branch
      %31 = sbr.rel (0) target = $region9
    $region8: #{tpu_custom_call.1} parent=1 // pred_region
      %33 = vsyncadd [#allocation6], 0
      %s35 = sshll.u32 %s1, 4
      %s36 = int_to_ptr.hbm [resolvable:$true] %s35
      %s37 = sshll.u32 [#allocation5], 4
      %s38 = int_to_ptr.vmem [resolvable:$true] %s37
      %40 = dma.hbm_to_vmem [thread:$0]  %s36, 128, %s38, [#allocation6]
    $region9: #{tpu_custom_call.1} parent=1 // pred_fallthru
      _
    // Predicated region
    $region10: #{tpu_custom_call.1} parent=1 // pred_check
      _
    $region11: #{tpu_custom_call.1} parent=1 // pred_check_branch
      %42 = sbr.rel (0) target = $region13
    $region12: #{tpu_custom_call.1} parent=1 // pred_region
      %44 = vsyncadd [#allocation6], 0
      %s45 = sshll.u32 %s2, 4
      %s46 = int_to_ptr.hbm [resolvable:$true] %s45
      %s47 = sshll.u32 [#allocation7], 4
      %s48 = int_to_ptr.vmem [resolvable:$true] %s47
      %53 = dma.hbm_to_vmem [thread:$0]  %s46, 2048, %s48, [#allocation6], 128, 128, 8
    $region13: #{tpu_custom_call.1} parent=1 // pred_fallthru
      _
    // Predicated region
    $region14: #{tpu_custom_call.1} parent=1 // pred_check
      _
    $region15: #{tpu_custom_call.1} parent=1 // pred_check_branch
      %55 = sbr.rel (0) target = $region17
    $region16: #{tpu_custom_call.1} parent=1 // pred_region
      _
    $region17: #{tpu_custom_call.1} parent=1 // pred_fallthru
      _
    // Predicated region
    $region18: #{tpu_custom_call.1} parent=1 // pred_check
      _
    $region19: #{tpu_custom_call.1} parent=1 // pred_check_branch
      %57 = sbr.rel (0) target = $region21
    $region20: #{tpu_custom_call.1} parent=1 // pred_region
      _
    $region21: #{tpu_custom_call.1} parent=1 // pred_fallthru
      _
    // Predicated region
    $region22: #{tpu_custom_call.1} parent=1 // pred_check
      _
    $region23: #{tpu_custom_call.1} parent=1 // pred_check_branch
      %59 = sbr.rel (0) target = $region25
    $region24: #{tpu_custom_call.1} parent=1 // pred_region
      _
    $region25: #{tpu_custom_call.1} parent=1 // pred_fallthru
      _
    // Predicated region
    $region26: #{tpu_custom_call.1} parent=1 // pred_check
      _
    $region27: #{tpu_custom_call.1} parent=1 // pred_check_branch
      %61 = sbr.rel (0) target = $region29
    $region28: #{tpu_custom_call.1} parent=1 // pred_region
      %63 = vsyncadd [#allocation9], 0
      %s64 = sshll.u32 %s6, 4
      %s65 = int_to_ptr.hbm [resolvable:$true] %s64
      %s66 = sshll.u32 [#allocation8], 4
      %s67 = int_to_ptr.vmem [resolvable:$true] %s66
      %72 = dma.hbm_to_vmem [thread:$0]  %s65, 2048, %s67, [#allocation9], 128, 128, 8
    $region29: #{tpu_custom_call.1} parent=1 // pred_fallthru
      _
    // Predicated region
    $region30: #{tpu_custom_call.1} parent=1 // pred_check
      _
    $region31: #{tpu_custom_call.1} parent=1 // pred_check_branch
      %74 = sbr.rel (0) target = $region33
    $region32: #{tpu_custom_call.1} parent=1 // pred_region
      _
    $region33: #{tpu_custom_call.1} parent=1 // pred_fallthru
      _
    // Predicated region
    $region34: #{tpu_custom_call.1} parent=1 // pred_check
      _
    $region35: #{tpu_custom_call.1} parent=1 // pred_check_branch
      %76 = sbr.rel (0) target = $region37
    $region36: #{tpu_custom_call.1} parent=1 // pred_region
      %78 = vsyncadd [#allocation9], 0
      %s79 = sshll.u32 %s8, 4
      %s80 = int_to_ptr.hbm [resolvable:$true] %s79
      %s81 = sshll.u32 [#allocation10], 4
      %s82 = int_to_ptr.vmem [resolvable:$true] %s81
      %87 = dma.hbm_to_vmem [thread:$0]  %s80, 2048, %s82, [#allocation9], 128, 128, 8
    $region37: #{tpu_custom_call.1} parent=1 // pred_fallthru
      _
    // Predicated region
    $region38: #{tpu_custom_call.1} parent=1 // pred_check
      _
    $region39: #{tpu_custom_call.1} parent=1 // pred_check_branch
      %89 = sbr.rel (0) target = $region41
    $region40: #{tpu_custom_call.1} parent=1 // pred_region
      _
    $region41: #{tpu_custom_call.1} parent=1 // pred_fallthru
      _
    // Predicated region
    $region42: #{tpu_custom_call.1} parent=1 // pred_check
      _
    $region43: #{tpu_custom_call.1} parent=1 // pred_check_branch
      %91 = sbr.rel (0) target = $region45
    $region44: #{tpu_custom_call.1} parent=1 // pred_region
      %93 = dma.done [#allocation3], 128
    $region45: #{tpu_custom_call.1} parent=1 // pred_fallthru
      _
    // Predicated region
    $region46: #{tpu_custom_call.1} parent=1 // pred_check
      _
    $region47: #{tpu_custom_call.1} parent=1 // pred_check_branch
      %95 = sbr.rel (0) target = $region49
    $region48: #{tpu_custom_call.1} parent=1 // pred_region
      %97 = dma.done [#allocation6], 128
    $region49: #{tpu_custom_call.1} parent=1 // pred_fallthru
      _
    // Predicated region
    $region50: #{tpu_custom_call.1} parent=1 // pred_check
      _
    $region51: #{tpu_custom_call.1} parent=1 // pred_check_branch
      %99 = sbr.rel (0) target = $region53
    $region52: #{tpu_custom_call.1} parent=1 // pred_region
      %101 = dma.done [#allocation6], 2048
    $region53: #{tpu_custom_call.1} parent=1 // pred_fallthru
      _
    // Predicated region
    $region54: #{tpu_custom_call.1} parent=1 // pred_check
      _
    $region55: #{tpu_custom_call.1} parent=1 // pred_check_branch
      %103 = sbr.rel (0) target = $region57
    $region56: #{tpu_custom_call.1} parent=1 // pred_region
      %105 = dma.done [#allocation9], 2048
    $region57: #{tpu_custom_call.1} parent=1 // pred_fallthru
      _
    // Predicated region
    $region58: #{tpu_custom_call.1} parent=1 // pred_check
      _
    $region59: #{tpu_custom_call.1} parent=1 // pred_check_branch
      %107 = sbr.rel (0) target = $region61
    $region60: #{tpu_custom_call.1} parent=1 // pred_region
      %109 = dma.done [#allocation9], 2048
    $region61: #{tpu_custom_call.1} parent=1 // pred_fallthru
      _
    %v110 = vld [vmem:[#allocation8] sm:$0xff]
    %v111 = vld [vmem:[#allocation8 + $0x8] sm:$0xff]
    %v112 = vld [vmem:[#allocation8 + $0x10] sm:$0xff]
    %v113 = vld [vmem:[#allocation8 + $0x18] sm:$0xff]
    %v114 = vld [vmem:[#allocation8 + $0x20] sm:$0xff]
    %v115 = vld [vmem:[#allocation8 + $0x28] sm:$0xff]
    %v116 = vld [vmem:[#allocation8 + $0x30] sm:$0xff]
    %v117 = vld [vmem:[#allocation8 + $0x38] sm:$0xff]
    %v118 = vld [vmem:[#allocation8 + $0x40] sm:$0xff]
    %v119 = vld [vmem:[#allocation8 + $0x48] sm:$0xff]
    %v120 = vld [vmem:[#allocation8 + $0x50] sm:$0xff]
    %v121 = vld [vmem:[#allocation8 + $0x58] sm:$0xff]
    %v122 = vld [vmem:[#allocation8 + $0x60] sm:$0xff]
    %v123 = vld [vmem:[#allocation8 + $0x68] sm:$0xff]
    %v124 = vld [vmem:[#allocation8 + $0x70] sm:$0xff]
    %v125 = vld [vmem:[#allocation8 + $0x78] sm:$0xff]
    %v126 = vld [vmem:[%s4] sm:$0x1]
    %v127 = vld [vmem:[%s5] sm:$0x1]
    %v128 = vld [vmem:[%s7] sm:$0x1]
    %v129 = vadd.f32 %v127, %v128
    %v130 = vld [vmem:[#allocation2] sm:$0xff]
    %v131 = vld [vmem:[#allocation7] sm:$0xff]
    %v132 = vld [vmem:[#allocation7 + $0x8] sm:$0xff]
    %v133 = vld [vmem:[#allocation7 + $0x10] sm:$0xff]
    %v134 = vld [vmem:[#allocation7 + $0x18] sm:$0xff]
    %v135 = vld [vmem:[#allocation7 + $0x20] sm:$0xff]
    %v136 = vld [vmem:[#allocation7 + $0x28] sm:$0xff]
    %v137 = vld [vmem:[#allocation7 + $0x30] sm:$0xff]
    %v138 = vld [vmem:[#allocation7 + $0x38] sm:$0xff]
    %v139 = vld [vmem:[#allocation7 + $0x40] sm:$0xff]
    %v140 = vld [vmem:[#allocation7 + $0x48] sm:$0xff]
    %v141 = vld [vmem:[#allocation7 + $0x50] sm:$0xff]
    %v142 = vld [vmem:[#allocation7 + $0x58] sm:$0xff]
    %v143 = vld [vmem:[#allocation7 + $0x60] sm:$0xff]
    %v144 = vld [vmem:[#allocation7 + $0x68] sm:$0xff]
    %v145 = vld [vmem:[#allocation7 + $0x70] sm:$0xff]
    %v146 = vld [vmem:[#allocation7 + $0x78] sm:$0xff]
    %v147 = vld [vmem:[%s3] sm:$0x1]
    %v149 = vperm.slane %v147, 0
    %151 = vmatpush.msra.mxu0 %v146
    %152 = vmatpush.msra.mxu0 %v145
    %153 = vmatpush.msra.mxu0 %v144
    %154 = vmatpush.msra.mxu0 %v143
    %155 = vmatpush.msra.mxu0 %v142
    %156 = vmatpush.msra.mxu0 %v141
    %157 = vmatpush.msra.mxu0 %v140
    %158 = vmatpush.msra.mxu0 %v139
    %159 = vmatpush.msra.mxu0 %v138
    %160 = vmatpush.msra.mxu0 %v137
    %161 = vmatpush.msra.mxu0 %v136
    %162 = vmatpush.msra.mxu0 %v135
    %163 = vmatpush.msra.mxu0 %v134
    %164 = vmatpush.msra.mxu0 %v133
    %165 = vmatpush.msra.mxu0 %v132
    %166 = vmatpush.msra.mxu0 %v131
    %167 = vmatmul.f32.gmra.mxu0 %v130
    %v168 = vpop.f32.mrf.mxu0
    %v169 = vadd.f32 %v149, %v168
    %170 = vdwg.mxu0
    %v171 = vld [vmem:[#allocation5] sm:$0xff]
    %173 = vset.pattern.permute.xlu0 0
    %174 = vperm.xlu0 %173, %v171
    %v175 = vpop.permute.xlu0 %174
    %v178 = vperm.slane %v126, 0
    %v180 = vmul.f32 %v175, %v178
    %v182 = vperm.slane %v129, 0
    %v184 = vadd.f32 %v180, %v182
    %185 = vset.pattern.permute.xlu0 1
    %186 = vperm.xlu0 %185, %v171
    %v187 = vpop.permute.xlu0 %186
    %v189 = vmul.f32 %v187, %v178
    %v190 = vadd.f32 %v189, %v182
    %191 = vset.pattern.permute.xlu0 2
    %192 = vperm.xlu0 %191, %v171
    %v193 = vpop.permute.xlu0 %192
    %v195 = vmul.f32 %v193, %v178
    %v196 = vadd.f32 %v195, %v182
    %197 = vset.pattern.permute.xlu0 3
    %198 = vperm.xlu0 %197, %v171
    %v199 = vpop.permute.xlu0 %198
    %v201 = vmul.f32 %v199, %v178
    %v202 = vadd.f32 %v201, %v182
    %203 = vset.pattern.permute.xlu0 4
    %204 = vperm.xlu0 %203, %v171
    %v205 = vpop.permute.xlu0 %204
    %v207 = vmul.f32 %v205, %v178
    %v208 = vadd.f32 %v207, %v182
    %209 = vset.pattern.permute.xlu0 5
    %210 = vperm.xlu0 %209, %v171
    %v211 = vpop.permute.xlu0 %210
    %v213 = vmul.f32 %v211, %v178
    %v214 = vadd.f32 %v213, %v182
    %215 = vset.pattern.permute.xlu0 6
    %216 = vperm.xlu0 %215, %v171
    %v217 = vpop.permute.xlu0 %216
    %v219 = vmul.f32 %v217, %v178
    %v220 = vadd.f32 %v219, %v182
    %221 = vset.pattern.permute.xlu0 7
    %222 = vperm.xlu0 %221, %v171
    %v223 = vpop.permute.xlu0 %222
    %v225 = vmul.f32 %v223, %v178
    %v226 = vadd.f32 %v225, %v182
    %227 = vmatpush.msra.mxu0 %v125
    %228 = vmatpush.msra.mxu0 %v124
    %229 = vmatpush.msra.mxu0 %v123
    %230 = vmatpush.msra.mxu0 %v122
    %231 = vmatpush.msra.mxu0 %v121
    %232 = vmatpush.msra.mxu0 %v120
    %233 = vmatpush.msra.mxu0 %v119
    %234 = vmatpush.msra.mxu0 %v118
    %235 = vmatpush.msra.mxu0 %v117
    %236 = vmatpush.msra.mxu0 %v116
    %237 = vmatpush.msra.mxu0 %v115
    %238 = vmatpush.msra.mxu0 %v114
    %239 = vmatpush.msra.mxu0 %v113
    %240 = vmatpush.msra.mxu0 %v112
    %241 = vmatpush.msra.mxu0 %v111
    %242 = vmatpush.msra.mxu0 %v110
    %243 = vmatmul.f32.gmra.mxu0 %v169
    %v244 = vpop.f32.mrf.mxu0
    %v245 = vadd.f32 0.0, %v244
    %246 = vdwg.mxu0
    %v247 = vadd.f32 %v184, %v245
    %v248 = vtanh.pop %v247
    %249 = vmatpush.msra.mxu0 %v125
    %250 = vmatpush.msra.mxu0 %v124
    %251 = vmatpush.msra.mxu0 %v123
    %252 = vmatpush.msra.mxu0 %v122
    %253 = vmatpush.msra.mxu0 %v121
    %254 = vmatpush.msra.mxu0 %v120
    %255 = vmatpush.msra.mxu0 %v119
    %256 = vmatpush.msra.mxu0 %v118
    %257 = vmatpush.msra.mxu0 %v117
    %258 = vmatpush.msra.mxu0 %v116
    %259 = vmatpush.msra.mxu0 %v115
    %260 = vmatpush.msra.mxu0 %v114
    %261 = vmatpush.msra.mxu0 %v113
    %262 = vmatpush.msra.mxu0 %v112
    %263 = vmatpush.msra.mxu0 %v111
    %264 = vmatpush.msra.mxu0 %v110
    %265 = vmatmul.f32.gmra.mxu0 %v248
    %v266 = vpop.f32.mrf.mxu0
    %v267 = vadd.f32 0.0, %v266
    %268 = vdwg.mxu0
    %v269 = vadd.f32 %v190, %v267
    %v270 = vtanh.pop %v269
    %271 = vmatpush.msra.mxu0 %v125
    %272 = vmatpush.msra.mxu0 %v124
    %273 = vmatpush.msra.mxu0 %v123
    %274 = vmatpush.msra.mxu0 %v122
    %275 = vmatpush.msra.mxu0 %v121
    %276 = vmatpush.msra.mxu0 %v120
    %277 = vmatpush.msra.mxu0 %v119
    %278 = vmatpush.msra.mxu0 %v118
    %279 = vmatpush.msra.mxu0 %v117
    %280 = vmatpush.msra.mxu0 %v116
    %281 = vmatpush.msra.mxu0 %v115
    %282 = vmatpush.msra.mxu0 %v114
    %283 = vmatpush.msra.mxu0 %v113
    %284 = vmatpush.msra.mxu0 %v112
    %285 = vmatpush.msra.mxu0 %v111
    %286 = vmatpush.msra.mxu0 %v110
    %287 = vmatmul.f32.gmra.mxu0 %v270
    %v288 = vpop.f32.mrf.mxu0
    %v289 = vadd.f32 0.0, %v288
    %290 = vdwg.mxu0
    %v291 = vadd.f32 %v196, %v289
    %v292 = vtanh.pop %v291
    %293 = vmatpush.msra.mxu0 %v125
    %294 = vmatpush.msra.mxu0 %v124
    %295 = vmatpush.msra.mxu0 %v123
    %296 = vmatpush.msra.mxu0 %v122
    %297 = vmatpush.msra.mxu0 %v121
    %298 = vmatpush.msra.mxu0 %v120
    %299 = vmatpush.msra.mxu0 %v119
    %300 = vmatpush.msra.mxu0 %v118
    %301 = vmatpush.msra.mxu0 %v117
    %302 = vmatpush.msra.mxu0 %v116
    %303 = vmatpush.msra.mxu0 %v115
    %304 = vmatpush.msra.mxu0 %v114
    %305 = vmatpush.msra.mxu0 %v113
    %306 = vmatpush.msra.mxu0 %v112
    %307 = vmatpush.msra.mxu0 %v111
    %308 = vmatpush.msra.mxu0 %v110
    %309 = vmatmul.f32.gmra.mxu0 %v292
    %v310 = vpop.f32.mrf.mxu0
    %v311 = vadd.f32 0.0, %v310
    %312 = vdwg.mxu0
    %v313 = vadd.f32 %v202, %v311
    %v314 = vtanh.pop %v313
    %315 = vmatpush.msra.mxu0 %v125
    %316 = vmatpush.msra.mxu0 %v124
    %317 = vmatpush.msra.mxu0 %v123
    %318 = vmatpush.msra.mxu0 %v122
    %319 = vmatpush.msra.mxu0 %v121
    %320 = vmatpush.msra.mxu0 %v120
    %321 = vmatpush.msra.mxu0 %v119
    %322 = vmatpush.msra.mxu0 %v118
    %323 = vmatpush.msra.mxu0 %v117
    %324 = vmatpush.msra.mxu0 %v116
    %325 = vmatpush.msra.mxu0 %v115
    %326 = vmatpush.msra.mxu0 %v114
    %327 = vmatpush.msra.mxu0 %v113
    %328 = vmatpush.msra.mxu0 %v112
    %329 = vmatpush.msra.mxu0 %v111
    %330 = vmatpush.msra.mxu0 %v110
    %331 = vmatmul.f32.gmra.mxu0 %v314
    %v332 = vpop.f32.mrf.mxu0
    %v333 = vadd.f32 0.0, %v332
    %334 = vdwg.mxu0
    %v335 = vadd.f32 %v208, %v333
    %v336 = vtanh.pop %v335
    %337 = vmatpush.msra.mxu0 %v125
    %338 = vmatpush.msra.mxu0 %v124
    %339 = vmatpush.msra.mxu0 %v123
    %340 = vmatpush.msra.mxu0 %v122
    %341 = vmatpush.msra.mxu0 %v121
    %342 = vmatpush.msra.mxu0 %v120
    %343 = vmatpush.msra.mxu0 %v119
    %344 = vmatpush.msra.mxu0 %v118
    %345 = vmatpush.msra.mxu0 %v117
    %346 = vmatpush.msra.mxu0 %v116
    %347 = vmatpush.msra.mxu0 %v115
    %348 = vmatpush.msra.mxu0 %v114
    %349 = vmatpush.msra.mxu0 %v113
    %350 = vmatpush.msra.mxu0 %v112
    %351 = vmatpush.msra.mxu0 %v111
    %352 = vmatpush.msra.mxu0 %v110
    %353 = vmatmul.f32.gmra.mxu0 %v336
    %v354 = vpop.f32.mrf.mxu0
    %v355 = vadd.f32 0.0, %v354
    %356 = vdwg.mxu0
    %v357 = vadd.f32 %v214, %v355
    %v358 = vtanh.pop %v357
    %359 = vmatpush.msra.mxu0 %v125
    %360 = vmatpush.msra.mxu0 %v124
    %361 = vmatpush.msra.mxu0 %v123
    %362 = vmatpush.msra.mxu0 %v122
    %363 = vmatpush.msra.mxu0 %v121
    %364 = vmatpush.msra.mxu0 %v120
    %365 = vmatpush.msra.mxu0 %v119
    %366 = vmatpush.msra.mxu0 %v118
    %367 = vmatpush.msra.mxu0 %v117
    %368 = vmatpush.msra.mxu0 %v116
    %369 = vmatpush.msra.mxu0 %v115
    %370 = vmatpush.msra.mxu0 %v114
    %371 = vmatpush.msra.mxu0 %v113
    %372 = vmatpush.msra.mxu0 %v112
    %373 = vmatpush.msra.mxu0 %v111
    %374 = vmatpush.msra.mxu0 %v110
    %375 = vmatmul.f32.gmra.mxu0 %v358
    %v376 = vpop.f32.mrf.mxu0
    %v377 = vadd.f32 0.0, %v376
    %378 = vdwg.mxu0
    %v379 = vadd.f32 %v220, %v377
    %v380 = vtanh.pop %v379
    %381 = vmatpush.msra.mxu0 %v125
    %382 = vmatpush.msra.mxu0 %v124
    %383 = vmatpush.msra.mxu0 %v123
    %384 = vmatpush.msra.mxu0 %v122
    %385 = vmatpush.msra.mxu0 %v121
    %386 = vmatpush.msra.mxu0 %v120
    %387 = vmatpush.msra.mxu0 %v119
    %388 = vmatpush.msra.mxu0 %v118
    %389 = vmatpush.msra.mxu0 %v117
    %390 = vmatpush.msra.mxu0 %v116
    %391 = vmatpush.msra.mxu0 %v115
    %392 = vmatpush.msra.mxu0 %v114
    %393 = vmatpush.msra.mxu0 %v113
    %394 = vmatpush.msra.mxu0 %v112
    %395 = vmatpush.msra.mxu0 %v111
    %396 = vmatpush.msra.mxu0 %v110
    %397 = vmatmul.f32.gmra.mxu0 %v380
    %v398 = vpop.f32.mrf.mxu0
    %v399 = vadd.f32 0.0, %v398
    %400 = vdwg.mxu0
    %v401 = vadd.f32 %v226, %v399
    %v402 = vtanh.pop %v401
    %v403 = vld [vmem:[#allocation10] sm:$0xff]
    %v404 = vld [vmem:[#allocation10 + $0x8] sm:$0xff]
    %v405 = vld [vmem:[#allocation10 + $0x10] sm:$0xff]
    %v406 = vld [vmem:[#allocation10 + $0x18] sm:$0xff]
    %v407 = vld [vmem:[#allocation10 + $0x20] sm:$0xff]
    %v408 = vld [vmem:[#allocation10 + $0x28] sm:$0xff]
    %v409 = vld [vmem:[#allocation10 + $0x30] sm:$0xff]
    %v410 = vld [vmem:[#allocation10 + $0x38] sm:$0xff]
    %v411 = vld [vmem:[#allocation10 + $0x40] sm:$0xff]
    %v412 = vld [vmem:[#allocation10 + $0x48] sm:$0xff]
    %v413 = vld [vmem:[#allocation10 + $0x50] sm:$0xff]
    %v414 = vld [vmem:[#allocation10 + $0x58] sm:$0xff]
    %v415 = vld [vmem:[#allocation10 + $0x60] sm:$0xff]
    %v416 = vld [vmem:[#allocation10 + $0x68] sm:$0xff]
    %v417 = vld [vmem:[#allocation10 + $0x70] sm:$0xff]
    %v418 = vld [vmem:[#allocation10 + $0x78] sm:$0xff]
    %v419 = vld [vmem:[%s9] sm:$0x1]
    %v421 = vperm.slane %v419, 0
    %423 = vmatpush.msra.mxu0 %v418
    %424 = vmatpush.msra.mxu0 %v417
    %425 = vmatpush.msra.mxu0 %v416
    %426 = vmatpush.msra.mxu0 %v415
    %427 = vmatpush.msra.mxu0 %v414
    %428 = vmatpush.msra.mxu0 %v413
    %429 = vmatpush.msra.mxu0 %v412
    %430 = vmatpush.msra.mxu0 %v411
    %431 = vmatpush.msra.mxu0 %v410
    %432 = vmatpush.msra.mxu0 %v409
    %433 = vmatpush.msra.mxu0 %v408
    %434 = vmatpush.msra.mxu0 %v407
    %435 = vmatpush.msra.mxu0 %v406
    %436 = vmatpush.msra.mxu0 %v405
    %437 = vmatpush.msra.mxu0 %v404
    %438 = vmatpush.msra.mxu0 %v403
    %439 = vmatmul.f32.gmra.mxu0 %v402
    %v440 = vpop.f32.mrf.mxu0
    %v441 = vadd.f32 %v421, %v440
    %442 = vdwg.mxu0
    %443 = vst [vmem:[#allocation11] sm:$0xff] %v441
    // Predicated region
    $region62: #{tpu_custom_call.1} parent=1 // pred_check
      _
    $region63: #{tpu_custom_call.1} parent=1 // pred_check_branch
      %445 = sbr.rel (0) target = $region65
    $region64: #{tpu_custom_call.1} parent=1 // pred_region
      %447 = vsyncadd [#allocation4], 0
      %s449 = sshll.u32 [#allocation11], 4
      %s450 = int_to_ptr.vmem [resolvable:$true] %s449
      %s451 = sshll.u32 %s10, 4
      %s452 = int_to_ptr.hbm [resolvable:$true] %s451
      %454 = dma.vmem_to_hbm [thread:$0]  %s450, 128, %s452, [#allocation4]
    $region65: #{tpu_custom_call.1} parent=1 // pred_fallthru
      _
    // Predicated region
    $region66: #{tpu_custom_call.1} parent=1 // pred_check
      _
    $region67: #{tpu_custom_call.1} parent=1 // pred_check_branch
      %456 = sbr.rel (0) target = $region69
    $region68: #{tpu_custom_call.1} parent=1 // pred_region
      %458 = dma.done [#allocation4], 128
    $region69: #{tpu_custom_call.1} parent=1 // pred_fallthru
      _
    %459 = vsyncpa [#allocation3], 1
    %460 = vsyncpa [#allocation6], 1
    %461 = vsyncpa [#allocation9], 1
    %462 = vsyncpa [#allocation4], 1

</llo_original>
